<compile_context>
chip_gen: v6e
topology: v6e:2x2x1
jax: 0.10.0
libtpu: 0.0.40
codegen_flags: <defaults>
</compile_context>

<pallas_src>
import functools
import math

import jax
import jax.numpy as jnp
from jax.experimental import pallas as pl
from jax.experimental.pallas import tpu as pltpu


# ----------------------------------------------------------------------------
# Pallas kernel: one batch-block per grid step.  Fuses the (folded) conv and
# LayerNorm.  All operands stay in vregs; no VMEM scratch.
# ----------------------------------------------------------------------------
def modalemb_kernel(x_ref, w_ref, const_ref, gamma_ref, beta_ref, o_ref,
                    *, ksize, d_true):
    Bb, Lp, C = x_ref.shape           # Lp = L + K - 1 (host-padded)
    _, L, Dp = o_ref.shape            # Dp = d_model rounded up to 128

    xp = x_ref[...]                   # (Bb, Lp, C)

    # Conv1d (with the embedding Linear folded into the weights) as K shifted
    # matmuls on the MXU; rows flattened to Bb*L for a tall M dimension.
    acc = jnp.zeros((Bb * L, Dp), jnp.float32)
    for k in range(ksize):                                   # static unroll
        xs = xp[:, k:k + L, :].reshape(Bb * L, C)
        acc = acc + jnp.dot(xs, w_ref[k],
                            preferred_element_type=jnp.float32)

    # + host-precomputed constant term: conv(pe + b_emb) + b_conv
    acc = acc.reshape(Bb, L, Dp) + const_ref[...]            # (Bb, L, Dp)

    # LayerNorm over the true d_model columns.  Columns >= d_true are exactly
    # zero (padded weight/const columns are zero), so sums over all Dp lanes
    # divided by d_true are correct; only the variance needs a column mask.
    inv_d = 1.0 / d_true
    mean = jnp.sum(acc, axis=-1, keepdims=True) * inv_d
    cent = acc - mean
    if d_true == Dp:
        cm = cent
    else:
        col = jax.lax.broadcasted_iota(jnp.int32, (1, 1, Dp), 2)
        cm = jnp.where(col < d_true, cent, 0.0)
    var = jnp.sum(cm * cm, axis=-1, keepdims=True) * inv_d
    out = cent * jax.lax.rsqrt(var + 1e-5)                   # eps = nn.LayerNorm default
    out = out * gamma_ref[...] + beta_ref[...]
    o_ref[...] = out.astype(o_ref.dtype)


def _round_up(n, m):
    return ((n + m - 1) // m) * m


def _pick_batch_block(B, L, target_rows=512):
    """Largest divisor of B whose flattened row count stays <= target_rows."""
    bb = 1
    for cand in range(1, B + 1):
        if B % cand == 0 and cand * L <= target_rows:
            bb = cand
    return bb


def modalemb_proj(x, we, be, pe, wc, bc, gamma, beta):
    """x: (B, L, C_in) float32.  Returns (B, L, d_model) float32."""
    B, L, C = x.shape
    K, E, D = wc.shape
    assert we.shape == (C, E) and pe.shape == (L, E)
    pad_l = (K - 1) // 2
    pad_r = K - 1 - pad_l
    Dp = _round_up(D, 128)

    # ---- host-side algebraic folding (tiny, done once) ----
    wcomb = jnp.einsum('ce,ked->kcd', we, wc)                    # (K, C, D)
    base = pe + be[None, :]                                      # (L, E)
    base_p = jnp.pad(base, ((pad_l, pad_r), (0, 0)))             # (L+K-1, E)
    const = bc[None, :] + sum(base_p[k:k + L] @ wc[k] for k in range(K))

    # lane-dense padding of d_model to a multiple of 128
    wcomb_p = jnp.pad(wcomb, ((0, 0), (0, 0), (0, Dp - D)))      # (K, C, Dp)
    const_p = jnp.pad(const, ((0, 0), (0, Dp - D))).reshape(1, L, Dp)
    gamma_p = jnp.pad(gamma, (0, Dp - D)).reshape(1, 1, Dp)
    beta_p = jnp.pad(beta, (0, Dp - D)).reshape(1, 1, Dp)

    # 'same' zero padding of x along L, done once on the host
    x_p = jnp.pad(x, ((0, 0), (pad_l, pad_r), (0, 0)))           # (B, L+K-1, C)
    Lp = L + K - 1

    Bb = _pick_batch_block(B, L)
    grid = (B // Bb,)

    kernel = functools.partial(modalemb_kernel, ksize=K, d_true=D)

    grid_spec = pltpu.PrefetchScalarGridSpec(
        num_scalar_prefetch=0,
        grid=grid,
        in_specs=[
            pl.BlockSpec((Bb, Lp, C), lambda i: (i, 0, 0)),      # padded x
            pl.BlockSpec((K, C, Dp), lambda i: (0, 0, 0)),       # folded conv W
            pl.BlockSpec((1, L, Dp), lambda i: (0, 0, 0)),       # PE/bias const
            pl.BlockSpec((1, 1, Dp), lambda i: (0, 0, 0)),       # LN gamma (padded)
            pl.BlockSpec((1, 1, Dp), lambda i: (0, 0, 0)),       # LN beta  (padded)
        ],
        out_specs=pl.BlockSpec((Bb, L, Dp), lambda i: (i, 0, 0)),
    )

    out = pl.pallas_call(
        kernel,
        out_shape=jax.ShapeDtypeStruct((B, L, Dp), jnp.float32),
        grid_spec=grid_spec,
        compiler_params=pltpu.CompilerParams(
            dimension_semantics=("parallel",)),
    )(x_p, wcomb_p, const_p, gamma_p, beta_p)

    return out[:, :, :D] if Dp != D else out


# ----------------------------------------------------------------------------
# Parameter construction (deterministic) + plain-JAX unfused reference
# ----------------------------------------------------------------------------
def make_positional_embedding(max_len, d):
    position = jnp.arange(max_len, dtype=jnp.float32)[:, None]
    div_term = jnp.exp(jnp.arange(0, d, 2, dtype=jnp.float32)
                       * (-math.log(10000.0) / d))
    pe = jnp.zeros((max_len, d), jnp.float32)
    pe = pe.at[:, 0::2].set(jnp.sin(position * div_term))
    pe = pe.at[:, 1::2].set(jnp.cos(position * div_term))
    return pe


def reference(x, we, be, pe, wc, bc, gamma, beta):
    K = wc.shape[0]
    L = x.shape[1]
    pad_l = (K - 1) // 2
    pad_r = K - 1 - pad_l
    emb = x @ we + be + pe[None]
    padded = jnp.pad(emb, ((0, 0), (pad_l, pad_r), (0, 0)))
    acc = bc + sum(padded[:, k:k + L, :] @ wc[k] for k in range(K))
    mean = acc.mean(-1, keepdims=True)
    var = ((acc - mean) ** 2).mean(-1, keepdims=True)
    return (acc - mean) / jnp.sqrt(var + 1e-5) * gamma + beta


if __name__ == "__main__":
    B, L, C_in = 2, 16, 4
    embedim, d_model, K, max_len = 32, 32, 3, 64

    key = jax.random.PRNGKey(0)
    k_x, k_we, k_be, k_wc, k_bc, k_g, k_b = jax.random.split(key, 7)

    x = jax.random.normal(k_x, (B, L, C_in), jnp.float32)
    we = jax.random.normal(k_we, (C_in, embedim), jnp.float32) * 0.1
    be = jax.random.normal(k_be, (embedim,), jnp.float32) * 0.1
    wc = jax.random.normal(k_wc, (K, embedim, d_model), jnp.float32) * 0.1
    bc = jax.random.normal(k_bc, (d_model,), jnp.float32) * 0.1
    gamma = 1.0 + 0.1 * jax.random.normal(k_g, (d_model,), jnp.float32)
    beta = 0.1 * jax.random.normal(k_b, (d_model,), jnp.float32)
    pe = make_positional_embedding(max_len, embedim)[:L]

    out = modalemb_proj(x, we, be, pe, wc, bc, gamma, beta)
    out = jax.block_until_ready(out)

    ref = reference(x, we, be, pe, wc, bc, gamma, beta)
    assert out.shape == (B, L, d_model)
    assert jnp.allclose(out, ref, atol=1e-4, rtol=1e-4), \
        float(jnp.max(jnp.abs(out - ref)))

    print("KERNEL_OK")
</pallas_src>

<mosaic_0001>
module attributes {stable_mosaic.version = 11 : i64} {
  func.func @modalemb_kernel(%arg0: i32, %arg1: memref<2x18x4xf32, #tpu.memory_space<vmem>>, %arg2: memref<3x4x128xf32, #tpu.memory_space<vmem>>, %arg3: memref<1x16x128xf32, #tpu.memory_space<vmem>>, %arg4: memref<1x1x128xf32, #tpu.memory_space<vmem>>, %arg5: memref<1x1x128xf32, #tpu.memory_space<vmem>>, %arg6: memref<2x16x128xf32, #tpu.memory_space<vmem>>) attributes {dimension_semantics = [#tpu.dimension_semantics<parallel>], iteration_bounds = array<i64: 1>, scalar_prefetch = 0 : i64, scratch_operands = 0 : i64, tpu.core_type = #tpu.core_type<tc>, window_params = [{transform_indices = @transform_0, window_bounds = array<i64: 2, 18, 4>}, {pipeline_mode = #tpu.pipeline_mode<synchronous>, transform_indices = @transform_1, window_bounds = array<i64: 3, 4, 128>}, {pipeline_mode = #tpu.pipeline_mode<synchronous>, transform_indices = @transform_2, window_bounds = array<i64: 1, 16, 128>}, {pipeline_mode = #tpu.pipeline_mode<synchronous>, transform_indices = @transform_3, window_bounds = array<i64: 1, 1, 128>}, {pipeline_mode = #tpu.pipeline_mode<synchronous>, transform_indices = @transform_4, window_bounds = array<i64: 1, 1, 128>}, {transform_indices = @transform_5, window_bounds = array<i64: 2, 16, 128>}]} {
    %c0 = arith.constant 0 : index
    %c0_0 = arith.constant 0 : index
    %c0_1 = arith.constant 0 : index
    %0 = vector.load %arg1[%c0, %c0_0, %c0_1] : memref<2x18x4xf32, #tpu.memory_space<vmem>>, vector<2x18x4xf32>
    %cst = arith.constant 0.000000e+00 : f32
    %1 = vector.broadcast %cst : f32 to vector<32x128xf32>
    %2 = vector.extract_strided_slice %0 {offsets = [0, 0, 0], sizes = [2, 16, 4], strides = [1, 1, 1]} : vector<2x18x4xf32> to vector<2x16x4xf32>
    %3 = vector.shape_cast %2 : vector<2x16x4xf32> to vector<32x4xf32>
    %c0_2 = arith.constant 0 : index
    %c0_3 = arith.constant 0 : index
    %c0_4 = arith.constant 0 : index
    %4 = vector.load %arg2[%c0_2, %c0_3, %c0_4] : memref<3x4x128xf32, #tpu.memory_space<vmem>>, vector<1x4x128xf32>
    %5 = vector.shape_cast %4 : vector<1x4x128xf32> to vector<4x128xf32>
    %cst_5 = arith.constant dense<0.000000e+00> : vector<32x128xf32>
    %6 = tpu.matmul %3, %5, %cst_5 {dimension_numbers = #tpu.dot_dimension_numbers<[1], [0], [0], [1], [0, 0, 1, 1], [], []>} : vector<32x4xf32>, vector<4x128xf32>, vector<32x128xf32> -> vector<32x128xf32>
    %7 = arith.addf %1, %6 : vector<32x128xf32>
    %8 = vector.extract_strided_slice %0 {offsets = [0, 1, 0], sizes = [2, 16, 4], strides = [1, 1, 1]} : vector<2x18x4xf32> to vector<2x16x4xf32>
    %9 = vector.shape_cast %8 : vector<2x16x4xf32> to vector<32x4xf32>
    %c1 = arith.constant 1 : index
    %c0_6 = arith.constant 0 : index
    %c0_7 = arith.constant 0 : index
    %10 = vector.load %arg2[%c1, %c0_6, %c0_7] : memref<3x4x128xf32, #tpu.memory_space<vmem>>, vector<1x4x128xf32>
    %11 = vector.shape_cast %10 : vector<1x4x128xf32> to vector<4x128xf32>
    %cst_8 = arith.constant dense<0.000000e+00> : vector<32x128xf32>
    %12 = tpu.matmul %9, %11, %cst_8 {dimension_numbers = #tpu.dot_dimension_numbers<[1], [0], [0], [1], [0, 0, 1, 1], [], []>} : vector<32x4xf32>, vector<4x128xf32>, vector<32x128xf32> -> vector<32x128xf32>
    %13 = arith.addf %7, %12 : vector<32x128xf32>
    %14 = vector.extract_strided_slice %0 {offsets = [0, 2, 0], sizes = [2, 16, 4], strides = [1, 1, 1]} : vector<2x18x4xf32> to vector<2x16x4xf32>
    %15 = vector.shape_cast %14 : vector<2x16x4xf32> to vector<32x4xf32>
    %c2 = arith.constant 2 : index
    %c0_9 = arith.constant 0 : index
    %c0_10 = arith.constant 0 : index
    %16 = vector.load %arg2[%c2, %c0_9, %c0_10] : memref<3x4x128xf32, #tpu.memory_space<vmem>>, vector<1x4x128xf32>
    %17 = vector.shape_cast %16 : vector<1x4x128xf32> to vector<4x128xf32>
    %cst_11 = arith.constant dense<0.000000e+00> : vector<32x128xf32>
    %18 = tpu.matmul %15, %17, %cst_11 {dimension_numbers = #tpu.dot_dimension_numbers<[1], [0], [0], [1], [0, 0, 1, 1], [], []>} : vector<32x4xf32>, vector<4x128xf32>, vector<32x128xf32> -> vector<32x128xf32>
    %19 = arith.addf %13, %18 : vector<32x128xf32>
    %20 = vector.shape_cast %19 : vector<32x128xf32> to vector<2x16x128xf32>
    %c0_12 = arith.constant 0 : index
    %c0_13 = arith.constant 0 : index
    %c0_14 = arith.constant 0 : index
    %21 = vector.load %arg3[%c0_12, %c0_13, %c0_14] : memref<1x16x128xf32, #tpu.memory_space<vmem>>, vector<1x16x128xf32>
    %22 = vector.broadcast %21 : vector<1x16x128xf32> to vector<2x16x128xf32>
    %23 = arith.addf %20, %22 : vector<2x16x128xf32>
    %cst_15 = arith.constant dense<0.000000e+00> : vector<2x16xf32>
    %24 = vector.multi_reduction <add>, %23, %cst_15 [2] : vector<2x16x128xf32> to vector<2x16xf32>
    %25 = vector.shape_cast %24 : vector<2x16xf32> to vector<2x16x1xf32>
    %cst_16 = arith.constant 3.125000e-02 : f32
    %26 = vector.broadcast %cst_16 : f32 to vector<2x16x1xf32>
    %27 = arith.mulf %25, %26 : vector<2x16x1xf32>
    %28 = vector.broadcast %27 : vector<2x16x1xf32> to vector<2x16x128xf32>
    %29 = arith.subf %23, %28 : vector<2x16x128xf32>
    %30 = tpu.iota {dimensions = array<i32: 2>} : vector<1x1x128xi32>
    %c32_i32 = arith.constant 32 : i32
    %31 = vector.broadcast %c32_i32 : i32 to vector<1x1x128xi32>
    %32 = arith.cmpi slt, %30, %31 : vector<1x1x128xi32>
    %cst_17 = arith.constant 0.000000e+00 : f32
    %33 = vector.shape_cast %32 : vector<1x1x128xi1> to vector<1x1x128xi1>
    %34 = vector.broadcast %33 : vector<1x1x128xi1> to vector<2x16x128xi1>
    %35 = vector.broadcast %cst_17 : f32 to vector<2x16x128xf32>
    %36 = arith.select %34, %29, %35 : vector<2x16x128xi1>, vector<2x16x128xf32>
    %37 = arith.mulf %36, %36 : vector<2x16x128xf32>
    %cst_18 = arith.constant dense<0.000000e+00> : vector<2x16xf32>
    %38 = vector.multi_reduction <add>, %37, %cst_18 [2] : vector<2x16x128xf32> to vector<2x16xf32>
    %39 = vector.shape_cast %38 : vector<2x16xf32> to vector<2x16x1xf32>
    %cst_19 = arith.constant 3.125000e-02 : f32
    %40 = vector.broadcast %cst_19 : f32 to vector<2x16x1xf32>
    %41 = arith.mulf %39, %40 : vector<2x16x1xf32>
    %cst_20 = arith.constant 9.99999974E-6 : f32
    %42 = vector.broadcast %cst_20 : f32 to vector<2x16x1xf32>
    %43 = arith.addf %41, %42 : vector<2x16x1xf32>
    %44 = math.rsqrt %43 : vector<2x16x1xf32>
    %45 = vector.broadcast %44 : vector<2x16x1xf32> to vector<2x16x128xf32>
    %46 = arith.mulf %29, %45 : vector<2x16x128xf32>
    %c0_21 = arith.constant 0 : index
    %c0_22 = arith.constant 0 : index
    %c0_23 = arith.constant 0 : index
    %47 = vector.load %arg4[%c0_21, %c0_22, %c0_23] : memref<1x1x128xf32, #tpu.memory_space<vmem>>, vector<1x1x128xf32>
    %48 = vector.broadcast %47 : vector<1x1x128xf32> to vector<2x16x128xf32>
    %49 = arith.mulf %46, %48 : vector<2x16x128xf32>
    %c0_24 = arith.constant 0 : index
    %c0_25 = arith.constant 0 : index
    %c0_26 = arith.constant 0 : index
    %50 = vector.load %arg5[%c0_24, %c0_25, %c0_26] : memref<1x1x128xf32, #tpu.memory_space<vmem>>, vector<1x1x128xf32>
    %51 = vector.broadcast %50 : vector<1x1x128xf32> to vector<2x16x128xf32>
    %52 = arith.addf %49, %51 : vector<2x16x128xf32>
    %c0_27 = arith.constant 0 : index
    %c0_28 = arith.constant 0 : index
    %c0_29 = arith.constant 0 : index
    %53 = vector.load %arg6[%c0_27, %c0_28, %c0_29] : memref<2x16x128xf32, #tpu.memory_space<vmem>>, vector<2x16x128xf32>
    tpu.vector_store %arg6[%c0_27, %c0_28, %c0_29], %52 {strides = array<i32>} : memref<2x16x128xf32, #tpu.memory_space<vmem>>, vector<2x16x128xf32>,
    return
  }
  func.func @transform_0(%arg0: i32) -> (i32, i32, i32) {
    %c0_i32 = arith.constant 0 : i32
    %c0_i32_0 = arith.constant 0 : i32
    %c0_i32_1 = arith.constant 0 : i32
    return %arg0, %c0_i32, %c0_i32_0 : i32, i32, i32
  }
  func.func @transform_1(%arg0: i32) -> (i32, i32, i32) {
    %c0_i32 = arith.constant 0 : i32
    %c0_i32_0 = arith.constant 0 : i32
    %c0_i32_1 = arith.constant 0 : i32
    %c0_i32_2 = arith.constant 0 : i32
    return %c0_i32, %c0_i32_0, %c0_i32_1 : i32, i32, i32
  }
  func.func @transform_2(%arg0: i32) -> (i32, i32, i32) {
    %c0_i32 = arith.constant 0 : i32
    %c0_i32_0 = arith.constant 0 : i32
    %c0_i32_1 = arith.constant 0 : i32
    %c0_i32_2 = arith.constant 0 : i32
    return %c0_i32, %c0_i32_0, %c0_i32_1 : i32, i32, i32
  }
  func.func @transform_3(%arg0: i32) -> (i32, i32, i32) {
    %c0_i32 = arith.constant 0 : i32
    %c0_i32_0 = arith.constant 0 : i32
    %c0_i32_1 = arith.constant 0 : i32
    %c0_i32_2 = arith.constant 0 : i32
    return %c0_i32, %c0_i32_0, %c0_i32_1 : i32, i32, i32
  }
  func.func @transform_4(%arg0: i32) -> (i32, i32, i32) {
    %c0_i32 = arith.constant 0 : i32
    %c0_i32_0 = arith.constant 0 : i32
    %c0_i32_1 = arith.constant 0 : i32
    %c0_i32_2 = arith.constant 0 : i32
    return %c0_i32, %c0_i32_0, %c0_i32_1 : i32, i32, i32
  }
  func.func @transform_5(%arg0: i32) -> (i32, i32, i32) {
    %c0_i32 = arith.constant 0 : i32
    %c0_i32_0 = arith.constant 0 : i32
    %c0_i32_1 = arith.constant 0 : i32
    return %arg0, %c0_i32, %c0_i32_0 : i32, i32, i32
  }
}

</mosaic_0001>

<llo_original>
// kernel: tpu_custom_call.1
$region0: #{tpu_custom_call.1}
  #allocation0 [shape = 'u32[]', space=smem, size = 0x4, offset = 0x4, fixed_abs, tag = 'smem constant byte address 0x4 - core index']
  #allocation1 [shape = 'u32[144,128]{1,0:T(1,128)}', space=vmem, size = 0x12000, scoped, tag = 'internal scratch']
  %s0 = inlined_call_operand.vmem [shape: f32[2,18,4], index: 0, kind: input, shape index: {}]
  %s1 = inlined_call_operand.vmem [shape: f32[3,4,128], index: 1, kind: input, shape index: {}]
  %s2 = inlined_call_operand.vmem [shape: f32[1,16,128], index: 2, kind: input, shape index: {}]
  %s3 = inlined_call_operand.vmem [shape: f32[1,1,128], index: 3, kind: input, shape index: {}]
  %s4 = inlined_call_operand.vmem [shape: f32[1,1,128], index: 4, kind: input, shape index: {}]
  %s5 = inlined_call_operand.hbm [shape: f32[2,16,128], index: 5, kind: output, shape index: {}]
  %s6 = sld [smem:[#allocation0]]
  $region30: #{tpu_custom_call.1} parent=0
    _
  %s8 = ssub.s32 1, %s6
  %s9 = scalar_select 0, %s8, %s6
  $region1: #{tpu_custom_call.1} parent=0
    #allocation2 [shape = 'u8[16384]{0}', space=vmem, size = 0x4000, scoped, tag = 'output window, operand 0, single buffered']
    #allocation3 [shape = 's32[1]{0}', space=sflag, size = 0x4, scoped, tag = 'scoped memory for tpu_custom_call.1']
    %10 = vsyncpa [#allocation3], 0
    // Predicated region
    $region2: #{tpu_custom_call.1} parent=1 // pred_check
      _
    $region3: #{tpu_custom_call.1} parent=1 // pred_check_branch
      %12 = sbr.rel (0) target = $region5
    $region4: #{tpu_custom_call.1} parent=1 // pred_region
      _
    $region5: #{tpu_custom_call.1} parent=1 // pred_fallthru
      _
    // Predicated region
    $region6: #{tpu_custom_call.1} parent=1 // pred_check
      _
    $region7: #{tpu_custom_call.1} parent=1 // pred_check_branch
      %14 = sbr.rel (0) target = $region9
    $region8: #{tpu_custom_call.1} parent=1 // pred_region
      _
    $region9: #{tpu_custom_call.1} parent=1 // pred_fallthru
      _
    // Predicated region
    $region10: #{tpu_custom_call.1} parent=1 // pred_check
      _
    $region11: #{tpu_custom_call.1} parent=1 // pred_check_branch
      %16 = sbr.rel (0) target = $region13
    $region12: #{tpu_custom_call.1} parent=1 // pred_region
      _
    $region13: #{tpu_custom_call.1} parent=1 // pred_fallthru
      _
    // Predicated region
    $region14: #{tpu_custom_call.1} parent=1 // pred_check
      _
    $region15: #{tpu_custom_call.1} parent=1 // pred_check_branch
      %18 = sbr.rel (0) target = $region17
    $region16: #{tpu_custom_call.1} parent=1 // pred_region
      _
    $region17: #{tpu_custom_call.1} parent=1 // pred_fallthru
      _
    // Predicated region
    $region18: #{tpu_custom_call.1} parent=1 // pred_check
      _
    $region19: #{tpu_custom_call.1} parent=1 // pred_check_branch
      %20 = sbr.rel (0) target = $region21
    $region20: #{tpu_custom_call.1} parent=1 // pred_region
      _
    $region21: #{tpu_custom_call.1} parent=1 // pred_fallthru
      _
    %v21 = vld [vmem:[%s0] sm:$0xff]
    %v22 = vld [vmem:[%s0 + $0x8] sm:$0xff]
    %v23 = vld [vmem:[%s0 + $0x10] sm:$0x3]
    %v24 = vld [vmem:[%s0 + $0x18] sm:$0xff]
    %v25 = vld [vmem:[%s0 + $0x20] sm:$0xff]
    %v26 = vld [vmem:[%s0 + $0x28] sm:$0x3]
    %v27 = vld [vmem:[%s1] sm:$0xf]
    %vm34 = vcmask 1046528
    %v35 = vrot.slane %v21, 1
    %v36 = vrot.slane %v22, 1
    %v37 = vsel %vm34, %v35, %v36
    %v38 = vrot.slane %v23, 1
    %v39 = vsel %vm34, %v36, %v38
    %v40 = vrot.slane %v24, 1
    %v41 = vrot.slane %v25, 1
    %v42 = vsel %vm34, %v40, %v41
    %v43 = vrot.slane %v26, 1
    %v44 = vsel %vm34, %v41, %v43
    %s45 = scalar_lea.vmem %s1, 4
    %v46 = vld [vmem:[%s45] sm:$0xf]
    %vm47 = vcmask 31744
    %v48 = vsel %vm47, %v37, 0
    %v50 = vsel %vm47, %v39, 0
    %v52 = vsel %vm47, %v42, 0
    %v54 = vsel %vm47, %v44, 0
    %vm56 = vcmask 1043456
    %v58 = vsel %vm56, %v46, 0
    %60 = vmatprep.subr.mxu0 0.0
    %61 = vmatpush1.msra.mxu0 0.0
    %62 = vmatprep.subr.mxu0 0.0
    %63 = vmatpush1.msra.mxu0 0.0
    %64 = vmatprep.subr.mxu0 0.0
    %65 = vmatpush1.msra.mxu0 0.0
    %66 = vmatprep.subr.mxu0 0.0
    %67 = vmatpush1.msra.mxu0 0.0
    %68 = vmatprep.subr.mxu0 0.0
    %69 = vmatpush1.msra.mxu0 0.0
    %70 = vmatprep.subr.mxu0 0.0
    %71 = vmatpush1.msra.mxu0 0.0
    %72 = vmatprep.subr.mxu0 0.0
    %73 = vmatpush1.msra.mxu0 0.0
    %74 = vmatprep.subr.mxu0 0.0
    %75 = vmatpush1.msra.mxu0 0.0
    %76 = vmatprep.subr.mxu0 0.0
    %77 = vmatpush1.msra.mxu0 0.0
    %78 = vmatprep.subr.mxu0 0.0
    %79 = vmatpush1.msra.mxu0 0.0
    %80 = vmatprep.subr.mxu0 0.0
    %81 = vmatpush1.msra.mxu0 0.0
    %82 = vmatprep.subr.mxu0 0.0
    %83 = vmatpush1.msra.mxu0 0.0
    %84 = vmatprep.subr.mxu0 0.0
    %85 = vmatpush1.msra.mxu0 0.0
    %86 = vmatprep.subr.mxu0 0.0
    %87 = vmatpush1.msra.mxu0 0.0
    %88 = vmatprep.subr.mxu0 0.0
    %89 = vmatpush1.msra.mxu0 0.0
    %90 = vmatprep.subr.mxu0 0.0
    %91 = vmatpush1.msra.mxu0 %v58
    %92 = vmatprep.subr.mxu0 0.0
    %93 = vmatpush2.msra.mxu0 0.0
    %94 = vmatprep.subr.mxu0 0.0
    %95 = vmatpush2.msra.mxu0 0.0
    %96 = vmatprep.subr.mxu0 0.0
    %97 = vmatpush2.msra.mxu0 0.0
    %98 = vmatprep.subr.mxu0 0.0
    %99 = vmatpush2.msra.mxu0 0.0
    %100 = vmatprep.subr.mxu0 0.0
    %101 = vmatpush2.msra.mxu0 0.0
    %102 = vmatprep.subr.mxu0 0.0
    %103 = vmatpush2.msra.mxu0 0.0
    %104 = vmatprep.subr.mxu0 0.0
    %105 = vmatpush2.msra.mxu0 0.0
    %106 = vmatprep.subr.mxu0 0.0
    %107 = vmatpush2.msra.mxu0 0.0
    %108 = vmatprep.subr.mxu0 0.0
    %109 = vmatpush2.msra.mxu0 0.0
    %110 = vmatprep.subr.mxu0 0.0
    %111 = vmatpush2.msra.mxu0 0.0
    %112 = vmatprep.subr.mxu0 0.0
    %113 = vmatpush2.msra.mxu0 0.0
    %114 = vmatprep.subr.mxu0 0.0
    %115 = vmatpush2.msra.mxu0 0.0
    %116 = vmatprep.subr.mxu0 0.0
    %117 = vmatpush2.msra.mxu0 0.0
    %118 = vmatprep.subr.mxu0 0.0
    %119 = vmatpush2.msra.mxu0 0.0
    %120 = vmatprep.subr.mxu0 0.0
    %121 = vmatpush2.msra.mxu0 0.0
    %122 = vmatprep.subr.mxu0 0.0
    %123 = vmatpush2.msra.mxu0 0.0
    %124 = vmatprep.mubr.f32.mxu0 0.0
    %125 = vmatmul.mubr.f32.gmra.mxu0 %v48
    %v126 = vpop.f32.mrf.mxu0
    %v127 = vadd.f32 0.0, %v126
    %v128 = vpop.f32.mrf.mxu0
    %129 = vmatprep.mubr.f32.mxu0 0.0
    %130 = vmatmul.mubr.f32.gmra.mxu0 %v50
    %v131 = vpop.f32.mrf.mxu0
    %v132 = vadd.f32 0.0, %v131
    %v133 = vpop.f32.mrf.mxu0
    %134 = vmatprep.mubr.f32.mxu0 0.0
    %135 = vmatmul.mubr.f32.gmra.mxu0 %v52
    %v136 = vpop.f32.mrf.mxu0
    %v137 = vadd.f32 0.0, %v136
    %v138 = vpop.f32.mrf.mxu0
    %139 = vmatprep.mubr.f32.mxu0 0.0
    %140 = vmatmul.mubr.f32.gmra.mxu0 %v54
    %v141 = vpop.f32.mrf.mxu0
    %v142 = vadd.f32 0.0, %v141
    %v143 = vpop.f32.mrf.mxu0
    %144 = vdwg.mxu0
    %v145 = vsel %vm47, %v21, 0
    %v147 = vsel %vm47, %v22, 0
    %v149 = vsel %vm47, %v24, 0
    %v151 = vsel %vm47, %v25, 0
    %v154 = vsel %vm56, %v27, 0
    %156 = vmatprep.subr.mxu0 0.0
    %157 = vmatpush1.msra.mxu0 0.0
    %158 = vmatprep.subr.mxu0 0.0
    %159 = vmatpush1.msra.mxu0 0.0
    %160 = vmatprep.subr.mxu0 0.0
    %161 = vmatpush1.msra.mxu0 0.0
    %162 = vmatprep.subr.mxu0 0.0
    %163 = vmatpush1.msra.mxu0 0.0
    %164 = vmatprep.subr.mxu0 0.0
    %165 = vmatpush1.msra.mxu0 0.0
    %166 = vmatprep.subr.mxu0 0.0
    %167 = vmatpush1.msra.mxu0 0.0
    %168 = vmatprep.subr.mxu0 0.0
    %169 = vmatpush1.msra.mxu0 0.0
    %170 = vmatprep.subr.mxu0 0.0
    %171 = vmatpush1.msra.mxu0 0.0
    %172 = vmatprep.subr.mxu0 0.0
    %173 = vmatpush1.msra.mxu0 0.0
    %174 = vmatprep.subr.mxu0 0.0
    %175 = vmatpush1.msra.mxu0 0.0
    %176 = vmatprep.subr.mxu0 0.0
    %177 = vmatpush1.msra.mxu0 0.0
    %178 = vmatprep.subr.mxu0 0.0
    %179 = vmatpush1.msra.mxu0 0.0
    %180 = vmatprep.subr.mxu0 0.0
    %181 = vmatpush1.msra.mxu0 0.0
    %182 = vmatprep.subr.mxu0 0.0
    %183 = vmatpush1.msra.mxu0 0.0
    %184 = vmatprep.subr.mxu0 0.0
    %185 = vmatpush1.msra.mxu0 0.0
    %186 = vmatprep.subr.mxu0 0.0
    %187 = vmatpush1.msra.mxu0 %v154
    %188 = vmatprep.subr.mxu0 0.0
    %189 = vmatpush2.msra.mxu0 0.0
    %190 = vmatprep.subr.mxu0 0.0
    %191 = vmatpush2.msra.mxu0 0.0
    %192 = vmatprep.subr.mxu0 0.0
    %193 = vmatpush2.msra.mxu0 0.0
    %194 = vmatprep.subr.mxu0 0.0
    %195 = vmatpush2.msra.mxu0 0.0
    %196 = vmatprep.subr.mxu0 0.0
    %197 = vmatpush2.msra.mxu0 0.0
    %198 = vmatprep.subr.mxu0 0.0
    %199 = vmatpush2.msra.mxu0 0.0
    %200 = vmatprep.subr.mxu0 0.0
    %201 = vmatpush2.msra.mxu0 0.0
    %202 = vmatprep.subr.mxu0 0.0
    %203 = vmatpush2.msra.mxu0 0.0
    %204 = vmatprep.subr.mxu0 0.0
    %205 = vmatpush2.msra.mxu0 0.0
    %206 = vmatprep.subr.mxu0 0.0
    %207 = vmatpush2.msra.mxu0 0.0
    %208 = vmatprep.subr.mxu0 0.0
    %209 = vmatpush2.msra.mxu0 0.0
    %210 = vmatprep.subr.mxu0 0.0
    %211 = vmatpush2.msra.mxu0 0.0
    %212 = vmatprep.subr.mxu0 0.0
    %213 = vmatpush2.msra.mxu0 0.0
    %214 = vmatprep.subr.mxu0 0.0
    %215 = vmatpush2.msra.mxu0 0.0
    %216 = vmatprep.subr.mxu0 0.0
    %217 = vmatpush2.msra.mxu0 0.0
    %218 = vmatprep.subr.mxu0 0.0
    %219 = vmatpush2.msra.mxu0 0.0
    %220 = vmatprep.mubr.f32.mxu0 0.0
    %221 = vmatmul.mubr.f32.gmra.mxu0 %v145
    %v222 = vpop.f32.mrf.mxu0
    %v223 = vadd.f32 %v127, %v222
    %v224 = vpop.f32.mrf.mxu0
    %225 = vmatprep.mubr.f32.mxu0 0.0
    %226 = vmatmul.mubr.f32.gmra.mxu0 %v147
    %v227 = vpop.f32.mrf.mxu0
    %v228 = vadd.f32 %v132, %v227
    %v229 = vpop.f32.mrf.mxu0
    %230 = vmatprep.mubr.f32.mxu0 0.0
    %231 = vmatmul.mubr.f32.gmra.mxu0 %v149
    %v232 = vpop.f32.mrf.mxu0
    %v233 = vadd.f32 %v137, %v232
    %v234 = vpop.f32.mrf.mxu0
    %235 = vmatprep.mubr.f32.mxu0 0.0
    %236 = vmatmul.mubr.f32.gmra.mxu0 %v151
    %v237 = vpop.f32.mrf.mxu0
    %v238 = vadd.f32 %v142, %v237
    %v239 = vpop.f32.mrf.mxu0
    %240 = vdwg.mxu0
    %vm241 = vcmask 1045504
    %v242 = vrot.slane %v21, 2
    %v243 = vrot.slane %v22, 2
    %v244 = vsel %vm241, %v242, %v243
    %v245 = vrot.slane %v23, 2
    %v246 = vsel %vm241, %v243, %v245
    %v247 = vrot.slane %v24, 2
    %v248 = vrot.slane %v25, 2
    %v249 = vsel %vm241, %v247, %v248
    %v250 = vrot.slane %v26, 2
    %v251 = vsel %vm241, %v248, %v250
    %s252 = scalar_lea.vmem %s1, 8
    %v253 = vld [vmem:[%s252] sm:$0xf]
    %v254 = vsel %vm47, %v244, 0
    %v256 = vsel %vm47, %v246, 0
    %v258 = vsel %vm47, %v249, 0
    %v260 = vsel %vm47, %v251, 0
    %v263 = vsel %vm56, %v253, 0
    %265 = vmatprep.subr.mxu0 0.0
    %266 = vmatpush1.msra.mxu0 0.0
    %267 = vmatprep.subr.mxu0 0.0
    %268 = vmatpush1.msra.mxu0 0.0
    %269 = vmatprep.subr.mxu0 0.0
    %270 = vmatpush1.msra.mxu0 0.0
    %271 = vmatprep.subr.mxu0 0.0
    %272 = vmatpush1.msra.mxu0 0.0
    %273 = vmatprep.subr.mxu0 0.0
    %274 = vmatpush1.msra.mxu0 0.0
    %275 = vmatprep.subr.mxu0 0.0
    %276 = vmatpush1.msra.mxu0 0.0
    %277 = vmatprep.subr.mxu0 0.0
    %278 = vmatpush1.msra.mxu0 0.0
    %279 = vmatprep.subr.mxu0 0.0
    %280 = vmatpush1.msra.mxu0 0.0
    %281 = vmatprep.subr.mxu0 0.0
    %282 = vmatpush1.msra.mxu0 0.0
    %283 = vmatprep.subr.mxu0 0.0
    %284 = vmatpush1.msra.mxu0 0.0
    %285 = vmatprep.subr.mxu0 0.0
    %286 = vmatpush1.msra.mxu0 0.0
    %287 = vmatprep.subr.mxu0 0.0
    %288 = vmatpush1.msra.mxu0 0.0
    %289 = vmatprep.subr.mxu0 0.0
    %290 = vmatpush1.msra.mxu0 0.0
    %291 = vmatprep.subr.mxu0 0.0
    %292 = vmatpush1.msra.mxu0 0.0
    %293 = vmatprep.subr.mxu0 0.0
    %294 = vmatpush1.msra.mxu0 0.0
    %295 = vmatprep.subr.mxu0 0.0
    %296 = vmatpush1.msra.mxu0 %v263
    %297 = vmatprep.subr.mxu0 0.0
    %298 = vmatpush2.msra.mxu0 0.0
    %299 = vmatprep.subr.mxu0 0.0
    %300 = vmatpush2.msra.mxu0 0.0
    %301 = vmatprep.subr.mxu0 0.0
    %302 = vmatpush2.msra.mxu0 0.0
    %303 = vmatprep.subr.mxu0 0.0
    %304 = vmatpush2.msra.mxu0 0.0
    %305 = vmatprep.subr.mxu0 0.0
    %306 = vmatpush2.msra.mxu0 0.0
    %307 = vmatprep.subr.mxu0 0.0
    %308 = vmatpush2.msra.mxu0 0.0
    %309 = vmatprep.subr.mxu0 0.0
    %310 = vmatpush2.msra.mxu0 0.0
    %311 = vmatprep.subr.mxu0 0.0
    %312 = vmatpush2.msra.mxu0 0.0
    %313 = vmatprep.subr.mxu0 0.0
    %314 = vmatpush2.msra.mxu0 0.0
    %315 = vmatprep.subr.mxu0 0.0
    %316 = vmatpush2.msra.mxu0 0.0
    %317 = vmatprep.subr.mxu0 0.0
    %318 = vmatpush2.msra.mxu0 0.0
    %319 = vmatprep.subr.mxu0 0.0
    %320 = vmatpush2.msra.mxu0 0.0
    %321 = vmatprep.subr.mxu0 0.0
    %322 = vmatpush2.msra.mxu0 0.0
    %323 = vmatprep.subr.mxu0 0.0
    %324 = vmatpush2.msra.mxu0 0.0
    %325 = vmatprep.subr.mxu0 0.0
    %326 = vmatpush2.msra.mxu0 0.0
    %327 = vmatprep.subr.mxu0 0.0
    %328 = vmatpush2.msra.mxu0 0.0
    %329 = vmatprep.mubr.f32.mxu0 0.0
    %330 = vmatmul.mubr.f32.gmra.mxu0 %v254
    %v331 = vpop.f32.mrf.mxu0
    %v332 = vadd.f32 0.0, %v331
    %v333 = vpop.f32.mrf.mxu0
    %334 = vmatprep.mubr.f32.mxu0 0.0
    %335 = vmatmul.mubr.f32.gmra.mxu0 %v256
    %v336 = vpop.f32.mrf.mxu0
    %v337 = vadd.f32 0.0, %v336
    %v338 = vpop.f32.mrf.mxu0
    %339 = vmatprep.mubr.f32.mxu0 0.0
    %340 = vmatmul.mubr.f32.gmra.mxu0 %v258
    %v341 = vpop.f32.mrf.mxu0
    %v342 = vadd.f32 0.0, %v341
    %v343 = vpop.f32.mrf.mxu0
    %344 = vmatprep.mubr.f32.mxu0 0.0
    %345 = vmatmul.mubr.f32.gmra.mxu0 %v260
    %v346 = vpop.f32.mrf.mxu0
    %v347 = vadd.f32 0.0, %v346
    %v348 = vpop.f32.mrf.mxu0
    %349 = vdwg.mxu0
    %v350 = vadd.f32 %v223, %v332
    %v351 = vadd.f32 %v228, %v337
    %v352 = vadd.f32 %v233, %v342
    %v353 = vadd.f32 %v238, %v347
    %v354 = vld [vmem:[%s2] sm:$0xff]
    %v355 = vld [vmem:[%s2 + $0x8] sm:$0xff]
    %v356 = vadd.f32 %v350, %v354
    %v357 = vadd.f32 %v351, %v355
    %v358 = vadd.f32 %v352, %v354
    %v359 = vadd.f32 %v353, %v355
    %360 = vadd.xlane.f32.xlu0 %v356
    %v361 = vpop.xlane.xlu0 %360
    %362 = vadd.xlane.f32.xlu0 %v357
    %v363 = vpop.xlane.xlu0 %362
    %364 = vadd.xlane.f32.xlu0 %v358
    %v365 = vpop.xlane.xlu0 %364
    %366 = vadd.xlane.f32.xlu0 %v359
    %v367 = vpop.xlane.xlu0 %366
    %v368 = vmul.f32 %v361, 0.03125
    %v369 = vmul.f32 %v363, 0.03125
    %v370 = vmul.f32 %v365, 0.03125
    %v371 = vmul.f32 %v367, 0.03125
    %v372 = vsub.f32 %v356, %v368
    %v373 = vsub.f32 %v357, %v369
    %v374 = vsub.f32 %v358, %v370
    %v375 = vsub.f32 %v359, %v371
    %v376 = vlaneseq
    %v377 = vand.u32 %v376, 127
    %vm378 = vcmp.lt.s32.totalorder %v377, 32
    %v379 = vsel %vm378, 1, 0
    %vm380 = vcmp.eq.s32.totalorder %v379, 1
    %v381 = vsel %vm380, %v372, 0.0
    %v382 = vsel %vm380, %v373, 0.0
    %v383 = vsel %vm380, %v374, 0.0
    %v384 = vsel %vm380, %v375, 0.0
    %v385 = vmul.f32 %v381, %v381
    %v386 = vmul.f32 %v382, %v382
    %v387 = vmul.f32 %v383, %v383
    %v388 = vmul.f32 %v384, %v384
    %389 = vadd.xlane.f32.xlu0 %v385
    %v390 = vpop.xlane.xlu0 %389
    %391 = vadd.xlane.f32.xlu0 %v386
    %v392 = vpop.xlane.xlu0 %391
    %393 = vadd.xlane.f32.xlu0 %v387
    %v394 = vpop.xlane.xlu0 %393
    %395 = vadd.xlane.f32.xlu0 %v388
    %v396 = vpop.xlane.xlu0 %395
    %v397 = vmul.f32 %v390, 0.03125
    %v398 = vmul.f32 %v392, 0.03125
    %v399 = vmul.f32 %v394, 0.03125
    %v400 = vmul.f32 %v396, 0.03125
    %v401 = vadd.f32 %v397, 1e-05
    %v402 = vadd.f32 %v398, 1e-05
    %v403 = vadd.f32 %v399, 1e-05
    %v404 = vadd.f32 %v400, 1e-05
    %v405 = vrsqrt.pop %v401
    %v406 = vrsqrt.pop %v402
    %v407 = vrsqrt.pop %v403
    %v408 = vrsqrt.pop %v404
    %v409 = vmul.f32 %v372, %v405
    %v410 = vmul.f32 %v373, %v406
    %v411 = vmul.f32 %v374, %v407
    %v412 = vmul.f32 %v375, %v408
    %v413 = vld [vmem:[%s3] sm:$0x1]
    %v415 = vlaneseq
    %v416 = vshrl.u32 %v415, 7
    %v417 = vsub.s32 0, %v416
    %v418 = vrot.slane %v413, %v417
    %v420 = vmul.f32 %v409, %v418
    %v421 = vmul.f32 %v410, %v418
    %v422 = vmul.f32 %v411, %v418
    %v423 = vmul.f32 %v412, %v418
    %v424 = vld [vmem:[%s4] sm:$0x1]
    %v426 = vlaneseq
    %v427 = vshrl.u32 %v426, 7
    %v428 = vsub.s32 0, %v427
    %v429 = vrot.slane %v424, %v428
    %v431 = vadd.f32 %v420, %v429
    %v432 = vadd.f32 %v421, %v429
    %v433 = vadd.f32 %v422, %v429
    %v434 = vadd.f32 %v423, %v429
    %435 = vst [vmem:[#allocation2] sm:$0xff] %v431
    %436 = vst [vmem:[#allocation2 + $0x8] sm:$0xff] %v432
    %437 = vst [vmem:[#allocation2 + $0x10] sm:$0xff] %v433
    %438 = vst [vmem:[#allocation2 + $0x18] sm:$0xff] %v434
    // Predicated region
    $region22: #{tpu_custom_call.1} parent=1 // pred_check
      _
    $region23: #{tpu_custom_call.1} parent=1 // pred_check_branch
      %440 = sbr.rel (0) target = $region25
    $region24: #{tpu_custom_call.1} parent=1 // pred_region
      %s442 = ssub.s32 512, 512
      %443 = vsyncadd [#allocation3], %s442
      %s444 = sshll.u32 [#allocation2], 4
      %s445 = int_to_ptr.vmem [resolvable:$true] %s444
      %450 = dma.vmem_to_hbm [thread:$0]  %s445, 512, %s5, [#allocation3], 128, 128, 8
    $region25: #{tpu_custom_call.1} parent=1 // pred_fallthru
      _
    // Predicated region
    $region26: #{tpu_custom_call.1} parent=1 // pred_check
      _
    $region27: #{tpu_custom_call.1} parent=1 // pred_check_branch
      %452 = sbr.rel (0) target = $region29
    $region28: #{tpu_custom_call.1} parent=1 // pred_region
      %453 = dma.done [#allocation3], 512
    $region29: #{tpu_custom_call.1} parent=1 // pred_fallthru
      _
    %454 = vsyncpa [#allocation3], 1

</llo_original>
